<compile_context>
chip_gen: v7x
topology: tpu7x:2x2x1
jax: 0.10.0
libtpu: 0.0.40
codegen_flags: <defaults>
</compile_context>

<pallas_src>
import functools

import numpy as np

import jax
import jax.numpy as jnp
from jax import lax
from jax.experimental import pallas as pl
from jax.experimental.pallas import tpu as pltpu

EPS = 1e-10


# ---------------------------------------------------------------------------
# Kernel 1: faithful forward path (t = 0 only).
# For t = 0 the window is always [0, min(T-1, l_fut)), so a single leading
# block per stream carries both the window and the fusion operand a[0]/b[0].
# ---------------------------------------------------------------------------
def _cdc_t0_kernel(a_ref, b_ref, out_ref, *, win, mode):
    a = a_ref[...].astype(jnp.float32)          # (B, max(win, 1))
    b = b_ref[...].astype(jnp.float32)
    a0 = a[:, 0:1]
    b0 = b[:, 0:1]

    if win > 0:
        aw = a[:, :win]
        bw = b[:, :win]
        dot = jnp.sum(aw * bw, axis=-1, keepdims=True)
        na = jnp.sqrt(jnp.sum(aw * aw, axis=-1, keepdims=True))
        nb = jnp.sqrt(jnp.sum(bw * bw, axis=-1, keepdims=True))
        w = dot / (na * nb + EPS)               # exact reference formula
    else:                                       # empty window -> w = 0
        w = jnp.zeros_like(a0)

    if mode == 0:        # cdc-zero / cdc-last
        fused = (a0 + w * b0) / (1.0 + w)       # no eps in (1+w): faithful
    else:                # cdc-vanilla
        fused = (a0 + w) * 0.5
    out_ref[...] = fused.astype(out_ref.dtype)


def _cdc_fuse_t0(a, b, *, l_his, l_fut, mode):
    """Fused score for frame t = 0 only (exactly what the reference forward emits)."""
    del l_his  # left = max(0, 0 - l_his) == 0 always for t = 0
    B, T = a.shape
    win = max(0, min(T - 1, l_fut))             # exclusive right bound, as in reference
    cols = max(win, 1)                          # always include column 0
    out = pl.pallas_call(
        functools.partial(_cdc_t0_kernel, win=win, mode=mode),
        out_shape=jax.ShapeDtypeStruct((B, 1), jnp.float32),
        in_specs=[pl.BlockSpec(memory_space=pltpu.MemorySpace.VMEM),
                  pl.BlockSpec(memory_space=pltpu.MemorySpace.VMEM)],
        out_specs=pl.BlockSpec(memory_space=pltpu.MemorySpace.VMEM),
    )(a[:, :cols], b[:, :cols])
    return out[:, 0]


# ---------------------------------------------------------------------------
# Kernel 2: all-frames generalization — banded, tiled over t, VPU only.
# Per grid step j (t-tile of width tb):
#   * load the mid block plus only the halo blocks actually needed
#     (prev iff l_his > 0, next iff l_fut > 0) via clamped BlockSpec maps,
#   * one tiny (1, slab) lane-validity mask (0 <= k <= T-2),
#   * the three window reductions are W statically-offset slice-accumulates,
#   * f32 VPU/EUP fusion arithmetic (approx reciprocal on the fast path).
# Compute is O(B * tb * W); VMEM footprint is per-tile (tens of KiB).
# ---------------------------------------------------------------------------
def _cdc_all_kernel(*refs, l_his, l_fut, T, tb, mode, precise, has_prev, has_next):
    n_blk = 1 + int(has_prev) + int(has_next)
    a_refs = refs[:n_blk]
    b_refs = refs[n_blk:2 * n_blk]
    out_ref = refs[2 * n_blk]
    j = pl.program_id(0)
    f32 = jnp.float32

    a_blks = [r[...].astype(f32) for r in a_refs]
    b_blks = [r[...].astype(f32) for r in b_refs]
    a_mid = a_blks[1] if has_prev else a_blks[0]
    b_mid = b_blks[1] if has_prev else b_blks[0]

    a_slab = a_blks[0] if n_blk == 1 else jnp.concatenate(a_blks, axis=-1)
    b_slab = b_blks[0] if n_blk == 1 else jnp.concatenate(b_blks, axis=-1)
    slab_w = n_blk * tb

    # Lane-validity mask in GLOBAL coordinates.  Slab column c holds global
    # frame k = (j - has_prev) * tb + c; window members must satisfy
    # 0 <= k <= T - 2 (right bound is exclusive at min(T-1, ...)).  Clamped
    # halo blocks and zero padding past T fall outside and are zeroed.
    c = lax.broadcasted_iota(jnp.int32, (1, slab_w), 1)
    k_glob = c + (j - int(has_prev)) * tb
    valid = ((k_glob >= 0) & (k_glob <= T - 2)).astype(f32)

    aw = a_slab * valid
    bw = b_slab * valid
    prod_ab = aw * bw
    prod_aa = aw * aw
    prod_bb = bw * bw

    # W-step static shift-accumulate (replaces the band-mask MXU matmul).
    base = int(has_prev) * tb                   # slab column of offset d = 0
    dot = jnp.zeros_like(a_mid)
    naa = jnp.zeros_like(a_mid)
    nbb = jnp.zeros_like(a_mid)
    for d in range(-l_his, l_fut):              # W = l_his + l_fut static offsets
        s = base + d
        dot = dot + prod_ab[:, s:s + tb]
        naa = naa + prod_aa[:, s:s + tb]
        nbb = nbb + prod_bb[:, s:s + tb]

    denom = jnp.sqrt(naa) * jnp.sqrt(nbb) + EPS     # exact reference formula
    if precise:
        w = dot / denom
    else:
        w = dot * pl.reciprocal(denom, approx=True)

    if mode == 0:
        if precise:
            fused = (a_mid + w * b_mid) / (1.0 + w)
        else:
            fused = (a_mid + w * b_mid) * pl.reciprocal(1.0 + w, approx=True)
    else:
        fused = (a_mid + w) * 0.5
    out_ref[...] = fused.astype(out_ref.dtype)


def _cdc_fuse_all_frames(a, b, *, l_his, l_fut, mode, tb=512, precise=False):
    """Fused scores for ALL frames (useful generalization of the reference loop).

    precise=False uses EUP approx reciprocals (~1e-3 relative error);
    precise=True is exact f32.
    """
    assert l_his >= 0 and l_fut >= 0
    B, T = a.shape
    f32 = jnp.float32
    a = a.astype(f32)
    b = b.astype(f32)

    # Pad batch to whole (8, 128) sublane tiles (avoids relayout copies).
    B_pad = ((B + 7) // 8) * 8
    if B_pad != B:
        a = jnp.pad(a, ((0, B_pad - B), (0, 0)))
        b = jnp.pad(b, ((0, B_pad - B), (0, 0)))

    # Tile width: lane-aligned, big enough for the halo window, no larger
    # than needed for small T, default 512 to amortize per-grid-step overhead
    # on single-TC v5e/v6e while keeping several tiles for v7x's two TCs.
    lane = 128
    tb = max(lane, min(int(tb), pl.cdiv(T, lane) * lane))
    tb = max(tb, pl.cdiv(max(l_his, l_fut, 1), lane) * lane)
    assert l_his <= tb and l_fut <= tb

    nb = pl.cdiv(T, tb)
    T_pad = nb * tb
    if T_pad != T:
        a = jnp.pad(a, ((0, 0), (0, T_pad - T)))
        b = jnp.pad(b, ((0, 0), (0, T_pad - T)))

    has_prev = l_his > 0
    has_next = l_fut > 0

    prev_spec = pl.BlockSpec((B_pad, tb), lambda j: (0, jnp.maximum(j - 1, 0)))
    mid_spec = pl.BlockSpec((B_pad, tb), lambda j: (0, j))
    next_spec = pl.BlockSpec((B_pad, tb), lambda j: (0, jnp.minimum(j + 1, nb - 1)))
    specs_one = (([prev_spec] if has_prev else [])
                 + [mid_spec]
                 + ([next_spec] if has_next else []))
    in_specs = specs_one + specs_one
    operands = tuple([a] * len(specs_one) + [b] * len(specs_one))

    kernel = functools.partial(
        _cdc_all_kernel, l_his=l_his, l_fut=l_fut, T=T, tb=tb, mode=mode,
        precise=precise, has_prev=has_prev, has_next=has_next)

    out = pl.pallas_call(
        kernel,
        out_shape=jax.ShapeDtypeStruct((B_pad, T_pad), jnp.float32),
        grid=(nb,),
        in_specs=in_specs,
        out_specs=pl.BlockSpec((B_pad, tb), lambda j: (0, j)),
        # t-tiles are independent -> "parallel" lets v7x shard them across TCs.
        # Per-tile VMEM is tens of KiB, far below every generation's budget.
        compiler_params=pltpu.CompilerParams(dimension_semantics=("parallel",)),
    )(*operands)
    return out[:B, :T]


# ---------------------------------------------------------------------------
# Module wrapper
# ---------------------------------------------------------------------------
class FusionStrategy:
    """JAX/Pallas port of the PyTorch FusionStrategy module (no parameters)."""

    def __init__(self, fusion_name, fusion_conf=None):
        self.fusion_name = fusion_name
        self.fusion_conf = fusion_conf or {"l_his": 0, "l_fut": 30}
        self._call_dict = {
            "trans-dom": self.trans_dom,
            "ctc-dom": self.ctc_dom,
            "equ-dom": self.equ_dom,
            "cdc-zero": self.cdc_zero,
            "cdc-last": self.cdc_last,
            "cdc-vanilla": self.cdc_vanilla,
        }

    def __call__(self, trans_scores, ctc_scores):
        assert trans_scores.shape == ctc_scores.shape
        return self._call_dict[self.fusion_name](trans_scores, ctc_scores)

    # ---- cdc family: faithful forward (reference `return` is inside the
    #      per-frame loop, so only the t = 0 score is emitted) ----------------
    def cdc_zero(self, trans_scores, ctc_scores):
        t0 = _cdc_fuse_t0(trans_scores, ctc_scores,
                          l_his=self.fusion_conf["l_his"],
                          l_fut=self.fusion_conf["l_fut"], mode=0)
        return [t0]

    def cdc_last(self, trans_scores, ctc_scores):
        # _padding_scores only rewrites 'placeholder' entries; with dense
        # numeric inputs it is the identity, so this reduces to cdc_zero.
        # TODO(synk): placeholder-aware padding has no numeric Pallas equivalent.
        return self.cdc_zero(trans_scores, ctc_scores)

    def cdc_vanilla(self, ctc_scores, ictc_scores):
        t0 = _cdc_fuse_t0(ctc_scores, ictc_scores,
                          l_his=self.fusion_conf["l_his"],
                          l_fut=self.fusion_conf["l_fut"], mode=1)
        return [t0]

    # ---- cdc family: all-frames generalization (banded/tiled kernel) --------
    def cdc_zero_all_frames(self, trans_scores, ctc_scores, precise=False):
        return _cdc_fuse_all_frames(trans_scores, ctc_scores,
                                    l_his=self.fusion_conf["l_his"],
                                    l_fut=self.fusion_conf["l_fut"],
                                    mode=0, precise=precise)

    def cdc_vanilla_all_frames(self, ctc_scores, ictc_scores, precise=False):
        return _cdc_fuse_all_frames(ctc_scores, ictc_scores,
                                    l_his=self.fusion_conf["l_his"],
                                    l_fut=self.fusion_conf["l_fut"],
                                    mode=1, precise=precise)

    # ---- placeholder-selection family ---------------------------------------
    # TODO(synk): trans_dom / ctc_dom / equ_dom select between streams based on
    # the string sentinel 'placeholder'; that is Python-object control flow with
    # no numeric Pallas equivalent, so it is not lowered to a kernel.
    def trans_dom(self, trans_scores, ctc_scores):
        raise NotImplementedError("placeholder-based selection not kernelized")

    def ctc_dom(self, trans_scores, ctc_scores):
        raise NotImplementedError("placeholder-based selection not kernelized")

    def equ_dom(self, trans_scores, ctc_scores):
        raise NotImplementedError("placeholder-based selection not kernelized")


# ---------------------------------------------------------------------------
# Pure-numpy per-frame replica of the PyTorch fusion math (all frames).
# ---------------------------------------------------------------------------
def _reference_cdc_np(a, b, l_his, l_fut, mode):
    a = np.asarray(a, dtype=np.float64)
    b = np.asarray(b, dtype=np.float64)
    B, T = a.shape
    out = np.zeros((B, T), dtype=np.float64)
    for t in range(T):
        left = max(0, t - l_his)
        right = min(T - 1, t + l_fut)
        v1 = a[:, left:right]
        v2 = b[:, left:right]
        dot = (v1 * v2).sum(axis=-1)
        w = dot / (np.linalg.norm(v1, axis=-1) * np.linalg.norm(v2, axis=-1) + EPS)
        if mode == 0:
            out[:, t] = (a[:, t] + w * b[:, t]) / (1.0 + w)
        else:
            out[:, t] = (a[:, t] + w) * 0.5
    return out


if __name__ == "__main__":
    key = jax.random.PRNGKey(0)
    k1, k2, k3, k4 = jax.random.split(key, 4)

    # ---- forward-path demo (faithful module semantics, small shapes) --------
    B, T = 4, 32
    trans = jax.nn.sigmoid(jax.random.normal(k1, (B, T), dtype=jnp.float32))
    ctc = jax.nn.sigmoid(jax.random.normal(k2, (B, T), dtype=jnp.float32))

    fs = FusionStrategy("cdc-zero")
    out = [jax.block_until_ready(o) for o in fs(trans, ctc)]
    ref0 = _reference_cdc_np(trans, ctc, fs.fusion_conf["l_his"],
                             fs.fusion_conf["l_fut"], mode=0)
    assert len(out) == 1
    assert np.allclose(np.asarray(out[0]), ref0[:, 0], rtol=1e-5, atol=1e-5)

    fs_v = FusionStrategy("cdc-vanilla")
    out_v = jax.block_until_ready(fs_v(trans, ctc)[0])
    ref_v = _reference_cdc_np(trans, ctc, fs_v.fusion_conf["l_his"],
                              fs_v.fusion_conf["l_fut"], mode=1)
    assert np.allclose(np.asarray(out_v), ref_v[:, 0], rtol=1e-5, atol=1e-5)

    fs_l = FusionStrategy("cdc-last")
    out_l = jax.block_until_ready(fs_l(trans, ctc)[0])
    assert np.allclose(np.asarray(out_l), ref0[:, 0], rtol=1e-5, atol=1e-5)

    # ---- all-frames banded kernel (generalization) ---------------------------
    # B=8 keeps sublanes aligned; T=200 pads to one 256-wide t-tile and
    # exercises the clamped next-halo map plus right-edge window shrinkage.
    B2, T2 = 8, 200
    a2 = jax.nn.sigmoid(jax.random.normal(k3, (B2, T2), dtype=jnp.float32))
    b2 = jax.nn.sigmoid(jax.random.normal(k4, (B2, T2), dtype=jnp.float32))

    ref_all = _reference_cdc_np(a2, b2, fs.fusion_conf["l_his"],
                                fs.fusion_conf["l_fut"], mode=0)
    full_precise = jax.block_until_ready(fs.cdc_zero_all_frames(a2, b2, precise=True))
    assert np.allclose(np.asarray(full_precise), ref_all, rtol=1e-4, atol=1e-4)

    full_fast = jax.block_until_ready(fs.cdc_zero_all_frames(a2, b2, precise=False))
    assert np.allclose(np.asarray(full_fast), ref_all, rtol=2e-2, atol=2e-2)

    ref_all_v = _reference_cdc_np(a2, b2, fs.fusion_conf["l_his"],
                                  fs.fusion_conf["l_fut"], mode=1)
    full_v = jax.block_until_ready(fs.cdc_vanilla_all_frames(a2, b2, precise=False))
    assert np.allclose(np.asarray(full_v), ref_all_v, rtol=2e-2, atol=2e-2)

    print("KERNEL_OK")
</pallas_src>

<mosaic_0001>
module attributes {stable_mosaic.version = 11 : i64} {
  func.func @_cdc_t0_kernel(%arg0: memref<4x30xf32, #tpu.memory_space<vmem>>, %arg1: memref<4x30xf32, #tpu.memory_space<vmem>>, %arg2: memref<4x1xf32, #tpu.memory_space<vmem>>) attributes {dimension_semantics = [], scalar_prefetch = 0 : i64, scratch_operands = 0 : i64, tpu.core_type = #tpu.core_type<tc>} {
    %c0 = arith.constant 0 : index
    %c0_0 = arith.constant 0 : index
    %0 = vector.load %arg0[%c0, %c0_0] : memref<4x30xf32, #tpu.memory_space<vmem>>, vector<4x30xf32>
    %c0_1 = arith.constant 0 : index
    %c0_2 = arith.constant 0 : index
    %1 = vector.load %arg1[%c0_1, %c0_2] : memref<4x30xf32, #tpu.memory_space<vmem>>, vector<4x30xf32>
    %2 = vector.extract_strided_slice %0 {offsets = [0, 0], sizes = [4, 1], strides = [1, 1]} : vector<4x30xf32> to vector<4x1xf32>
    %3 = vector.extract_strided_slice %1 {offsets = [0, 0], sizes = [4, 1], strides = [1, 1]} : vector<4x30xf32> to vector<4x1xf32>
    %4 = arith.mulf %0, %1 : vector<4x30xf32>
    %cst = arith.constant dense<0.000000e+00> : vector<4xf32>
    %5 = vector.multi_reduction <add>, %4, %cst [1] : vector<4x30xf32> to vector<4xf32>
    %6 = vector.shape_cast %5 : vector<4xf32> to vector<4x1xf32>
    %7 = arith.mulf %0, %0 : vector<4x30xf32>
    %cst_3 = arith.constant dense<0.000000e+00> : vector<4xf32>
    %8 = vector.multi_reduction <add>, %7, %cst_3 [1] : vector<4x30xf32> to vector<4xf32>
    %9 = vector.shape_cast %8 : vector<4xf32> to vector<4x1xf32>
    %10 = math.sqrt %9 : vector<4x1xf32>
    %11 = arith.mulf %1, %1 : vector<4x30xf32>
    %cst_4 = arith.constant dense<0.000000e+00> : vector<4xf32>
    %12 = vector.multi_reduction <add>, %11, %cst_4 [1] : vector<4x30xf32> to vector<4xf32>
    %13 = vector.shape_cast %12 : vector<4xf32> to vector<4x1xf32>
    %14 = math.sqrt %13 : vector<4x1xf32>
    %15 = arith.mulf %10, %14 : vector<4x1xf32>
    %cst_5 = arith.constant 1.000000e-10 : f32
    %16 = vector.broadcast %cst_5 : f32 to vector<4x1xf32>
    %17 = arith.addf %15, %16 : vector<4x1xf32>
    %18 = arith.divf %6, %17 : vector<4x1xf32>
    %19 = arith.mulf %18, %3 : vector<4x1xf32>
    %20 = arith.addf %2, %19 : vector<4x1xf32>
    %cst_6 = arith.constant 1.000000e+00 : f32
    %21 = vector.broadcast %cst_6 : f32 to vector<4x1xf32>
    %22 = arith.addf %21, %18 : vector<4x1xf32>
    %23 = arith.divf %20, %22 : vector<4x1xf32>
    %c0_7 = arith.constant 0 : index
    %c0_8 = arith.constant 0 : index
    %24 = vector.load %arg2[%c0_7, %c0_8] : memref<4x1xf32, #tpu.memory_space<vmem>>, vector<4x1xf32>
    tpu.vector_store %arg2[%c0_7, %c0_8], %23 {strides = array<i32>} : memref<4x1xf32, #tpu.memory_space<vmem>>, vector<4x1xf32>,
    return
  }
}

</mosaic_0001>

<llo_original>
// kernel: tpu_custom_call.1
$region0: #{tpu_custom_call.1}
  #allocation0 [shape = 'u32[]', space=smem, size = 0x4, offset = 0x4, fixed_abs, tag = 'smem constant byte address 0x4 - core index']
  #allocation1 [shape = 'u32[144,128]{1,0:T(1,128)}', space=vmem, size = 0x12000, scoped, tag = 'internal scratch']
  %s0 = inlined_call_operand.hbm [shape: f32[4,30], index: 0, kind: input, shape index: {}]
  %s1 = inlined_call_operand.hbm [shape: f32[4,30], index: 1, kind: input, shape index: {}]
  %s2 = inlined_call_operand.vmem [shape: f32[4,1], index: 2, kind: output, shape index: {}]
  %s3 = sld [smem:[#allocation0]]
  $region26: #{tpu_custom_call.1} parent=0
    _
  %s5 = ssub.s32 1, %s3
  %s6 = scalar_select 0, %s5, %s3
  $region1: #{tpu_custom_call.1} parent=0
    #allocation2 [shape = 'u8[2048]{0}', space=vmem, size = 0x800, scoped, tag = 'input window, operand 0, single buffered']
    #allocation3 [shape = 's32[1]{0}', space=sflag, size = 0x4, scoped, tag = 'scoped memory for tpu_custom_call.1']
    #allocation4 [shape = 'u8[2048]{0}', space=vmem, size = 0x800, scoped, tag = 'input window, operand 1, single buffered']
    #allocation5 [shape = 's32[1]{0}', space=sflag, size = 0x4, scoped, tag = 'scoped memory for tpu_custom_call.1']
    %7 = vsyncpa [#allocation3], 0
    %8 = vsyncpa [#allocation5], 0
    // Predicated region
    $region2: #{tpu_custom_call.1} parent=1 // pred_check
      _
    $region3: #{tpu_custom_call.1} parent=1 // pred_check_branch
      %10 = sbr.rel (0) target = $region5
    $region4: #{tpu_custom_call.1} parent=1 // pred_region
      %s12 = ssub.s32 64, 64
      %13 = vsyncadd [#allocation3], %s12
      %s15 = sshll.u32 [#allocation2], 4
      %s16 = int_to_ptr.vmem [resolvable:$true] %s15
      %18 = dma.hbm_to_vmem [thread:$0]  %s0, 64, %s16, [#allocation3]
    $region5: #{tpu_custom_call.1} parent=1 // pred_fallthru
      _
    // Predicated region
    $region6: #{tpu_custom_call.1} parent=1 // pred_check
      _
    $region7: #{tpu_custom_call.1} parent=1 // pred_check_branch
      %20 = sbr.rel (0) target = $region9
    $region8: #{tpu_custom_call.1} parent=1 // pred_region
      %s22 = ssub.s32 64, 64
      %23 = vsyncadd [#allocation5], %s22
      %s25 = sshll.u32 [#allocation4], 4
      %s26 = int_to_ptr.vmem [resolvable:$true] %s25
      %28 = dma.hbm_to_vmem [thread:$0]  %s1, 64, %s26, [#allocation5]
    $region9: #{tpu_custom_call.1} parent=1 // pred_fallthru
      _
    // Predicated region
    $region10: #{tpu_custom_call.1} parent=1 // pred_check
      _
    $region11: #{tpu_custom_call.1} parent=1 // pred_check_branch
      %30 = sbr.rel (0) target = $region13
    $region12: #{tpu_custom_call.1} parent=1 // pred_region
      %31 = dma.done [#allocation3], 64
    $region13: #{tpu_custom_call.1} parent=1 // pred_fallthru
      _
    // Predicated region
    $region14: #{tpu_custom_call.1} parent=1 // pred_check
      _
    $region15: #{tpu_custom_call.1} parent=1 // pred_check_branch
      %33 = sbr.rel (0) target = $region17
    $region16: #{tpu_custom_call.1} parent=1 // pred_region
      %34 = dma.done [#allocation5], 64
    $region17: #{tpu_custom_call.1} parent=1 // pred_fallthru
      _
    %v35 = vld [vmem:[#allocation2] sm:$0xf]
    %v36 = vld [vmem:[#allocation4] sm:$0xf]
    %v37 = vmul.f32 %v35, %v36
    %vm38 = vcmask 240640
    %v39 = vsel %vm38, %v37, 0.0
    %40 = vadd.xlane.f32.xlu0 %v39
    %v41 = vpop.xlane.xlu0 %40
    %v42 = vmul.f32 %v35, %v35
    %v43 = vsel %vm38, %v42, 0.0
    %44 = vadd.xlane.f32.xlu0 %v43
    %v45 = vpop.xlane.xlu0 %44
    %v46 = vrsqrt.pop %v45
    %v47 = vmul.f32 %v45, %v46
    %vm48 = vcmp.eq.f32.partialorder %v45, inf
    %v49 = vsel %vm48, %v45, %v47
    %vm50 = vcmp.eq.f32.partialorder %v45, 0.0
    %v51 = vand.u32 %v45, 2147483648
    %v52 = vsel %vm50, %v51, %v49
    %v53 = vmul.f32 %v36, %v36
    %v54 = vsel %vm38, %v53, 0.0
    %55 = vadd.xlane.f32.xlu0 %v54
    %v56 = vpop.xlane.xlu0 %55
    %v57 = vrsqrt.pop %v56
    %v58 = vmul.f32 %v56, %v57
    %vm59 = vcmp.eq.f32.partialorder %v56, inf
    %v60 = vsel %vm59, %v56, %v58
    %vm61 = vcmp.eq.f32.partialorder %v56, 0.0
    %v62 = vand.u32 %v56, 2147483648
    %v63 = vsel %vm61, %v62, %v60
    %v64 = vmul.f32 %v52, %v63
    %v65 = vadd.f32 %v64, 1e-10
    %v66 = vrcp.pop %v65
    %v67 = vmul.f32 %v41, %v66
    %v68 = vmul.f32 %v67, %v36
    %v69 = vadd.f32 %v35, %v68
    %v70 = vadd.f32 %v67, 1.0
    %v71 = vrcp.pop %v70
    %v72 = vmul.f32 %v69, %v71
    %vm73 = vcmask 3072
    %74 = vst.msk [vmem:[%s2] sm:$0xf] %vm73, %v72
    // Predicated region
    $region18: #{tpu_custom_call.1} parent=1 // pred_check
      _
    $region19: #{tpu_custom_call.1} parent=1 // pred_check_branch
      %76 = sbr.rel (0) target = $region21
    $region20: #{tpu_custom_call.1} parent=1 // pred_region
      _
    $region21: #{tpu_custom_call.1} parent=1 // pred_fallthru
      _
    // Predicated region
    $region22: #{tpu_custom_call.1} parent=1 // pred_check
      _
    $region23: #{tpu_custom_call.1} parent=1 // pred_check_branch
      %78 = sbr.rel (0) target = $region25
    $region24: #{tpu_custom_call.1} parent=1 // pred_region
      _
    $region25: #{tpu_custom_call.1} parent=1 // pred_fallthru
      _
    %79 = vsyncpa [#allocation3], 1
    %80 = vsyncpa [#allocation5], 1

</llo_original>
